<compile_context>
chip_gen: v7x
topology: tpu7x:2x2x1
jax: 0.10.0
libtpu: 0.0.40
codegen_flags: <defaults>
</compile_context>

<pallas_src>
import functools

import jax
import jax.numpy as jnp
from jax.experimental import pallas as pl
from jax.experimental.pallas import tpu as pltpu

_LANE = 128      # lane granule (last dim)
_SUBLANE = 8     # sublane granule (second-to-last dim) for f32 tiles


def _round_up(x, m):
    return (x + m - 1) // m * m


def _fused_mlp_kernel(x_ref, *rest, n_layers):
    """out = L_{n-1}(ReLU(... ReLU(L_0(x)) ...)); activations never leave VMEM.

    rest = (w_0, b_0, ..., w_{n-1}, b_{n-1}, out_ref).  Layer loop is unrolled
    at trace time.
    """
    o_ref = rest[-1]
    wb_refs = rest[:-1]
    act = x_ref[...]
    for j in range(n_layers):
        w = wb_refs[2 * j][...]           # stored in compute dtype (bf16 by default)
        b = wb_refs[2 * j + 1][...]       # f32, (1, N) broadcasts over the batch tile
        acc = jnp.dot(act.astype(w.dtype), w, preferred_element_type=jnp.float32)
        acc = acc + b                     # f32 epilogue
        if j != n_layers - 1:
            acc = jnp.maximum(acc, 0.0)   # ReLU between hidden layers only
        act = acc
    o_ref[...] = act.astype(o_ref.dtype)


def densenet_forward(x, params, *, tile_m=256, compute_dtype=jnp.bfloat16):
    """DenseNet forward (Linear -> ReLU -> ... -> Linear, normalize=False, no
    output nonlinearity) as one fused Pallas kernel.

    x:      (batch, in_features)
    params: list of (W, b) with W of shape (in, out) (transposed vs. PyTorch).
    """
    M, K0 = x.shape
    n_layers = len(params)
    assert n_layers >= 1
    assert params[0][0].shape[0] == K0

    # Feature dims of every activation.  Only *internal* dims are lane-padded
    # (padded weight rows/cols & biases are zero => real lanes are exact); the
    # input and final output keep their true widths so activations stream
    # HBM<->VMEM without any pad/slice copies.
    dims = [K0] + [w.shape[1] for w, _ in params]
    pdims = [K0] + [_round_up(d, _LANE) for d in dims[1:-1]] + [dims[-1]]

    w_itemsize = jnp.dtype(compute_dtype).itemsize
    param_bytes = sum(pK * pN * w_itemsize + pN * 4
                      for pK, pN in zip(pdims[:-1], pdims[1:]))

    # Per-generation VMEM budget.
    try:
        vmem_cap = int(pltpu.get_tpu_info().vmem_capacity_bytes)
    except Exception:                       # conservative fallback (v7x per-core)
        vmem_cap = 64 * 1024 * 1024
    vmem_limit = vmem_cap - vmem_cap // 8   # leave 12.5% headroom

    def vmem_budget(tm_, weight_bufs):
        io = 2 * tm_ * (K0 + dims[-1]) * x.dtype.itemsize   # double-buffered x/out tiles
        act = 4 * tm_ * max(pdims) * 4                      # rough f32 working set
        return weight_bufs * param_bytes + io + act + (4 << 20)  # + compiler scratch

    # Batch tile: as large as tile_m but never over-padding a tiny batch; make
    # the grid at least 2 steps so the "parallel" axis can use both v7x cores.
    tm = min(_round_up(tile_m, _SUBLANE), _round_up(M, _SUBLANE))
    if M > _SUBLANE and pl.cdiv(M, tm) < 2:
        tm = _round_up(pl.cdiv(M, 2), _SUBLANE)
    while vmem_budget(tm, 1) > vmem_limit and tm > _SUBLANE:
        tm = max(_SUBLANE, _round_up(tm // 2, _SUBLANE))
    assert vmem_budget(tm, 1) <= vmem_limit, (
        "parameters too large for the fused full-block kernel on this chip; "
        "add K/N tiling / cross-call weight prefetch (see TODO above)")
    grid_m = pl.cdiv(M, tm)   # ragged batch tail handled by Pallas block masking

    # One-time weight/bias prep: cast + zero-pad to lane-dense internal dims.
    wb = []
    wb_block_shapes = []
    for (W, b), pK, pN in zip(params, pdims[:-1], pdims[1:]):
        K, N = W.shape
        Wp = jnp.zeros((pK, pN), compute_dtype).at[:K, :N].set(W.astype(compute_dtype))
        bp = jnp.zeros((1, pN), jnp.float32).at[0, :N].set(b.astype(jnp.float32))
        wb.extend([Wp, bp])
        wb_block_shapes.extend([(pK, pN), (1, pN)])

    flops = 2 * M * sum(pK * pN for pK, pN in zip(pdims[:-1], pdims[1:]))
    bytes_accessed = M * (K0 + dims[-1]) * x.dtype.itemsize + param_bytes
    cost = pl.CostEstimate(flops=flops, transcendentals=0,
                           bytes_accessed=bytes_accessed)

    kernel = functools.partial(_fused_mlp_kernel, n_layers=n_layers)
    bcast = lambda i: (0, 0)                # grid-invariant weight/bias blocks

    def make_call(single_buffer_weights):
        spec_kwargs = ({"pipeline_mode": pl.Buffered(1)}
                       if single_buffer_weights else {})
        in_specs = [pl.BlockSpec((tm, K0), lambda i: (i, 0))]
        for shape in wb_block_shapes:
            in_specs.append(pl.BlockSpec(shape, bcast, **spec_kwargs))
        return pl.pallas_call(
            kernel,
            out_shape=jax.ShapeDtypeStruct((M, dims[-1]), x.dtype),
            grid_spec=pltpu.PrefetchScalarGridSpec(
                num_scalar_prefetch=0,
                grid=(grid_m,),
                in_specs=in_specs,
                out_specs=pl.BlockSpec((tm, dims[-1]), lambda i: (i, 0)),
            ),
            compiler_params=pltpu.CompilerParams(
                dimension_semantics=("parallel",),
                vmem_limit_bytes=int(vmem_limit),
            ),
            cost_estimate=cost,
        )

    # Grid-invariant weights don't need double buffering; fall back to default
    # pipelining only if this jax build rejects Buffered(1).
    try:
        return make_call(True)(x, *wb)
    except Exception:
        return make_call(False)(x, *wb)


def init_densenet_params(key, layers):
    """Matches nn.Linear default init (uniform +-1/sqrt(fan_in)); W is (in, out)."""
    params = []
    for j in range(len(layers) - 1):
        fan_in, fan_out = layers[j], layers[j + 1]
        key, kw, kb = jax.random.split(key, 3)
        bound = 1.0 / (fan_in ** 0.5)
        W = jax.random.uniform(kw, (fan_in, fan_out), jnp.float32, -bound, bound)
        b = jax.random.uniform(kb, (fan_out,), jnp.float32, -bound, bound)
        params.append((W, b))
    return params


if __name__ == "__main__":
    key = jax.random.PRNGKey(0)

    layers = [8, 32, 32, 4]   # DenseNet(layers, nn.ReLU) — small demo widths
    batch = 16

    key, kx, kp = jax.random.split(key, 3)
    x = jax.random.normal(kx, (batch, layers[0]), jnp.float32)
    params = init_densenet_params(kp, layers)

    # Pure-JAX reference of the same forward pass (f32).
    ref = x
    for j, (W, b) in enumerate(params):
        ref = ref @ W + b
        if j != len(params) - 1:
            ref = jnp.maximum(ref, 0.0)

    # Exact-math path (f32 weights / f32 MXU).
    out_f32 = jax.block_until_ready(
        densenet_forward(x, params, compute_dtype=jnp.float32))
    assert out_f32.shape == (batch, layers[-1])
    assert jnp.allclose(out_f32, ref, atol=1e-5, rtol=1e-5)

    # Default fast path (bf16 weights/activations into the MXU, f32 accumulate).
    out = jax.block_until_ready(densenet_forward(x, params))
    assert out.shape == (batch, layers[-1])
    assert jnp.allclose(out, ref, atol=5e-2, rtol=5e-2)

    print("KERNEL_OK")
</pallas_src>

<mosaic_0001>
module attributes {stable_mosaic.version = 11 : i64} {
  func.func @_fused_mlp_kernel(%arg0: i32, %arg1: memref<8x8xf32, #tpu.memory_space<vmem>>, %arg2: memref<8x128xf32, #tpu.memory_space<vmem>>, %arg3: memref<1x128xf32, #tpu.memory_space<vmem>>, %arg4: memref<128x128xf32, #tpu.memory_space<vmem>>, %arg5: memref<1x128xf32, #tpu.memory_space<vmem>>, %arg6: memref<128x4xf32, #tpu.memory_space<vmem>>, %arg7: memref<1x4xf32, #tpu.memory_space<vmem>>, %arg8: memref<8x4xf32, #tpu.memory_space<vmem>>) attributes {dimension_semantics = [#tpu.dimension_semantics<parallel>], iteration_bounds = array<i64: 2>, scalar_prefetch = 0 : i64, scratch_operands = 0 : i64, tpu.core_type = #tpu.core_type<tc>, window_params = [{transform_indices = @transform_0, window_bounds = array<i64: 8, 8>}, {pipeline_mode = #tpu.pipeline_mode<synchronous>, transform_indices = @transform_1, window_bounds = array<i64: 8, 128>}, {pipeline_mode = #tpu.pipeline_mode<synchronous>, transform_indices = @transform_2, window_bounds = array<i64: 1, 128>}, {pipeline_mode = #tpu.pipeline_mode<synchronous>, transform_indices = @transform_3, window_bounds = array<i64: 128, 128>}, {pipeline_mode = #tpu.pipeline_mode<synchronous>, transform_indices = @transform_4, window_bounds = array<i64: 1, 128>}, {pipeline_mode = #tpu.pipeline_mode<synchronous>, transform_indices = @transform_5, window_bounds = array<i64: 128, 4>}, {pipeline_mode = #tpu.pipeline_mode<synchronous>, transform_indices = @transform_6, window_bounds = array<i64: 1, 4>}, {transform_indices = @transform_7, window_bounds = array<i64: 8, 4>}]} {
    %c0 = arith.constant 0 : index
    %c0_0 = arith.constant 0 : index
    %0 = vector.load %arg1[%c0, %c0_0] : memref<8x8xf32, #tpu.memory_space<vmem>>, vector<8x8xf32>
    %c0_1 = arith.constant 0 : index
    %c0_2 = arith.constant 0 : index
    %1 = vector.load %arg2[%c0_1, %c0_2] : memref<8x128xf32, #tpu.memory_space<vmem>>, vector<8x128xf32>
    %c0_3 = arith.constant 0 : index
    %c0_4 = arith.constant 0 : index
    %2 = vector.load %arg3[%c0_3, %c0_4] : memref<1x128xf32, #tpu.memory_space<vmem>>, vector<1x128xf32>
    %cst = arith.constant dense<0.000000e+00> : vector<8x128xf32>
    %3 = tpu.matmul %0, %1, %cst {dimension_numbers = #tpu.dot_dimension_numbers<[1], [0], [0], [1], [0, 0, 1, 1], [], []>} : vector<8x8xf32>, vector<8x128xf32>, vector<8x128xf32> -> vector<8x128xf32>
    %4 = vector.broadcast %2 : vector<1x128xf32> to vector<8x128xf32>
    %5 = arith.addf %3, %4 : vector<8x128xf32>
    %cst_5 = arith.constant 0.000000e+00 : f32
    %6 = vector.broadcast %cst_5 : f32 to vector<8x128xf32>
    %7 = arith.maximumf %5, %6 : vector<8x128xf32>
    %c0_6 = arith.constant 0 : index
    %c0_7 = arith.constant 0 : index
    %8 = vector.load %arg4[%c0_6, %c0_7] : memref<128x128xf32, #tpu.memory_space<vmem>>, vector<128x128xf32>
    %c0_8 = arith.constant 0 : index
    %c0_9 = arith.constant 0 : index
    %9 = vector.load %arg5[%c0_8, %c0_9] : memref<1x128xf32, #tpu.memory_space<vmem>>, vector<1x128xf32>
    %cst_10 = arith.constant dense<0.000000e+00> : vector<8x128xf32>
    %10 = tpu.matmul %7, %8, %cst_10 {dimension_numbers = #tpu.dot_dimension_numbers<[1], [0], [0], [1], [0, 0, 1, 1], [], []>} : vector<8x128xf32>, vector<128x128xf32>, vector<8x128xf32> -> vector<8x128xf32>
    %11 = vector.broadcast %9 : vector<1x128xf32> to vector<8x128xf32>
    %12 = arith.addf %10, %11 : vector<8x128xf32>
    %cst_11 = arith.constant 0.000000e+00 : f32
    %13 = vector.broadcast %cst_11 : f32 to vector<8x128xf32>
    %14 = arith.maximumf %12, %13 : vector<8x128xf32>
    %c0_12 = arith.constant 0 : index
    %c0_13 = arith.constant 0 : index
    %15 = vector.load %arg6[%c0_12, %c0_13] : memref<128x4xf32, #tpu.memory_space<vmem>>, vector<128x4xf32>
    %c0_14 = arith.constant 0 : index
    %c0_15 = arith.constant 0 : index
    %16 = vector.load %arg7[%c0_14, %c0_15] : memref<1x4xf32, #tpu.memory_space<vmem>>, vector<1x4xf32>
    %cst_16 = arith.constant dense<0.000000e+00> : vector<8x4xf32>
    %17 = tpu.matmul %14, %15, %cst_16 {dimension_numbers = #tpu.dot_dimension_numbers<[1], [0], [0], [1], [0, 0, 1, 1], [], []>} : vector<8x128xf32>, vector<128x4xf32>, vector<8x4xf32> -> vector<8x4xf32>
    %18 = vector.broadcast %16 : vector<1x4xf32> to vector<8x4xf32>
    %19 = arith.addf %17, %18 : vector<8x4xf32>
    %c0_17 = arith.constant 0 : index
    %c0_18 = arith.constant 0 : index
    %20 = vector.load %arg8[%c0_17, %c0_18] : memref<8x4xf32, #tpu.memory_space<vmem>>, vector<8x4xf32>
    tpu.vector_store %arg8[%c0_17, %c0_18], %19 {strides = array<i32>} : memref<8x4xf32, #tpu.memory_space<vmem>>, vector<8x4xf32>,
    return
  }
  func.func @transform_0(%arg0: i32) -> (i32, i32) {
    %c0_i32 = arith.constant 0 : i32
    %c0_i32_0 = arith.constant 0 : i32
    return %arg0, %c0_i32 : i32, i32
  }
  func.func @transform_1(%arg0: i32) -> (i32, i32) {
    %c0_i32 = arith.constant 0 : i32
    %c0_i32_0 = arith.constant 0 : i32
    %c0_i32_1 = arith.constant 0 : i32
    return %c0_i32, %c0_i32_0 : i32, i32
  }
  func.func @transform_2(%arg0: i32) -> (i32, i32) {
    %c0_i32 = arith.constant 0 : i32
    %c0_i32_0 = arith.constant 0 : i32
    %c0_i32_1 = arith.constant 0 : i32
    return %c0_i32, %c0_i32_0 : i32, i32
  }
  func.func @transform_3(%arg0: i32) -> (i32, i32) {
    %c0_i32 = arith.constant 0 : i32
    %c0_i32_0 = arith.constant 0 : i32
    %c0_i32_1 = arith.constant 0 : i32
    return %c0_i32, %c0_i32_0 : i32, i32
  }
  func.func @transform_4(%arg0: i32) -> (i32, i32) {
    %c0_i32 = arith.constant 0 : i32
    %c0_i32_0 = arith.constant 0 : i32
    %c0_i32_1 = arith.constant 0 : i32
    return %c0_i32, %c0_i32_0 : i32, i32
  }
  func.func @transform_5(%arg0: i32) -> (i32, i32) {
    %c0_i32 = arith.constant 0 : i32
    %c0_i32_0 = arith.constant 0 : i32
    %c0_i32_1 = arith.constant 0 : i32
    return %c0_i32, %c0_i32_0 : i32, i32
  }
  func.func @transform_6(%arg0: i32) -> (i32, i32) {
    %c0_i32 = arith.constant 0 : i32
    %c0_i32_0 = arith.constant 0 : i32
    %c0_i32_1 = arith.constant 0 : i32
    return %c0_i32, %c0_i32_0 : i32, i32
  }
  func.func @transform_7(%arg0: i32) -> (i32, i32) {
    %c0_i32 = arith.constant 0 : i32
    %c0_i32_0 = arith.constant 0 : i32
    return %arg0, %c0_i32 : i32, i32
  }
}

module attributes {stable_mosaic.version = 11 : i64} {
  func.func @_fused_mlp_kernel(%arg0: i32, %arg1: memref<8x8xf32, #tpu.memory_space<vmem>>, %arg2: memref<8x128xf32, #tpu.memory_space<vmem>>, %arg3: memref<1x128xf32, #tpu.memory_space<vmem>>, %arg4: memref<128x128xf32, #tpu.memory_space<vmem>>, %arg5: memref<1x128xf32, #tpu.memory_space<vmem>>, %arg6: memref<128x4xf32, #tpu.memory_space<vmem>>, %arg7: memref<1x4xf32, #tpu.memory_space<vmem>>, %arg8: memref<8x4xf32, #tpu.memory_space<vmem>>) attributes {dimension_semantics = [#tpu.dimension_semantics<parallel>], iteration_bounds = array<i64: 2>, scalar_prefetch = 0 : i64, scratch_operands = 0 : i64, tpu.core_type = #tpu.core_type<tc>, window_params = [{transform_indices = @transform_0, window_bounds = array<i64: 8, 8>}, {pipeline_mode = #tpu.pipeline_mode<synchronous>, transform_indices = @transform_1, window_bounds = array<i64: 8, 128>}, {pipeline_mode = #tpu.pipeline_mode<synchronous>, transform_indices = @transform_2, window_bounds = array<i64: 1, 128>}, {pipeline_mode = #tpu.pipeline_mode<synchronous>, transform_indices = @transform_3, window_bounds = array<i64: 128, 128>}, {pipeline_mode = #tpu.pipeline_mode<synchronous>, transform_indices = @transform_4, window_bounds = array<i64: 1, 128>}, {pipeline_mode = #tpu.pipeline_mode<synchronous>, transform_indices = @transform_5, window_bounds = array<i64: 128, 4>}, {pipeline_mode = #tpu.pipeline_mode<synchronous>, transform_indices = @transform_6, window_bounds = array<i64: 1, 4>}, {transform_indices = @transform_7, window_bounds = array<i64: 8, 4>}]} {
    %c0 = arith.constant 0 : index
    %c0_0 = arith.constant 0 : index
    %0 = vector.load %arg1[%c0, %c0_0] : memref<8x8xf32, #tpu.memory_space<vmem>>, vector<8x8xf32>
    %c0_1 = arith.constant 0 : index
    %c0_2 = arith.constant 0 : index
    %1 = vector.load %arg2[%c0_1, %c0_2] : memref<8x128xf32, #tpu.memory_space<vmem>>, vector<8x128xf32>
    %c0_3 = arith.constant 0 : index
    %c0_4 = arith.constant 0 : index
    %2 = vector.load %arg3[%c0_3, %c0_4] : memref<1x128xf32, #tpu.memory_space<vmem>>, vector<1x128xf32>
    %cst = arith.constant dense<0.000000e+00> : vector<8x128xf32>
    %3 = tpu.matmul %0, %1, %cst {dimension_numbers = #tpu.dot_dimension_numbers<[1], [0], [0], [1], [0, 0, 1, 1], [], []>} : vector<8x8xf32>, vector<8x128xf32>, vector<8x128xf32> -> vector<8x128xf32>
    %4 = vector.broadcast %2 : vector<1x128xf32> to vector<8x128xf32>
    %5 = arith.addf %3, %4 : vector<8x128xf32>
    %cst_5 = arith.constant 0.000000e+00 : f32
    %6 = vector.broadcast %cst_5 : f32 to vector<8x128xf32>
    %7 = arith.maximumf %5, %6 : vector<8x128xf32>
    %c0_6 = arith.constant 0 : index
    %c0_7 = arith.constant 0 : index
    %8 = vector.load %arg4[%c0_6, %c0_7] : memref<128x128xf32, #tpu.memory_space<vmem>>, vector<128x128xf32>
    %c0_8 = arith.constant 0 : index
    %c0_9 = arith.constant 0 : index
    %9 = vector.load %arg5[%c0_8, %c0_9] : memref<1x128xf32, #tpu.memory_space<vmem>>, vector<1x128xf32>
    %cst_10 = arith.constant dense<0.000000e+00> : vector<8x128xf32>
    %10 = tpu.matmul %7, %8, %cst_10 {dimension_numbers = #tpu.dot_dimension_numbers<[1], [0], [0], [1], [0, 0, 1, 1], [], []>} : vector<8x128xf32>, vector<128x128xf32>, vector<8x128xf32> -> vector<8x128xf32>
    %11 = vector.broadcast %9 : vector<1x128xf32> to vector<8x128xf32>
    %12 = arith.addf %10, %11 : vector<8x128xf32>
    %cst_11 = arith.constant 0.000000e+00 : f32
    %13 = vector.broadcast %cst_11 : f32 to vector<8x128xf32>
    %14 = arith.maximumf %12, %13 : vector<8x128xf32>
    %c0_12 = arith.constant 0 : index
    %c0_13 = arith.constant 0 : index
    %15 = vector.load %arg6[%c0_12, %c0_13] : memref<128x4xf32, #tpu.memory_space<vmem>>, vector<128x4xf32>
    %c0_14 = arith.constant 0 : index
    %c0_15 = arith.constant 0 : index
    %16 = vector.load %arg7[%c0_14, %c0_15] : memref<1x4xf32, #tpu.memory_space<vmem>>, vector<1x4xf32>
    %cst_16 = arith.constant dense<0.000000e+00> : vector<8x4xf32>
    %17 = tpu.matmul %14, %15, %cst_16 {dimension_numbers = #tpu.dot_dimension_numbers<[1], [0], [0], [1], [0, 0, 1, 1], [], []>} : vector<8x128xf32>, vector<128x4xf32>, vector<8x4xf32> -> vector<8x4xf32>
    %18 = vector.broadcast %16 : vector<1x4xf32> to vector<8x4xf32>
    %19 = arith.addf %17, %18 : vector<8x4xf32>
    %c0_17 = arith.constant 0 : index
    %c0_18 = arith.constant 0 : index
    %20 = vector.load %arg8[%c0_17, %c0_18] : memref<8x4xf32, #tpu.memory_space<vmem>>, vector<8x4xf32>
    tpu.vector_store %arg8[%c0_17, %c0_18], %19 {strides = array<i32>} : memref<8x4xf32, #tpu.memory_space<vmem>>, vector<8x4xf32>,
    return
  }
  func.func @transform_0(%arg0: i32) -> (i32, i32) {
    %c0_i32 = arith.constant 0 : i32
    %c0_i32_0 = arith.constant 0 : i32
    return %arg0, %c0_i32 : i32, i32
  }
  func.func @transform_1(%arg0: i32) -> (i32, i32) {
    %c0_i32 = arith.constant 0 : i32
    %c0_i32_0 = arith.constant 0 : i32
    %c0_i32_1 = arith.constant 0 : i32
    return %c0_i32, %c0_i32_0 : i32, i32
  }
  func.func @transform_2(%arg0: i32) -> (i32, i32) {
    %c0_i32 = arith.constant 0 : i32
    %c0_i32_0 = arith.constant 0 : i32
    %c0_i32_1 = arith.constant 0 : i32
    return %c0_i32, %c0_i32_0 : i32, i32
  }
  func.func @transform_3(%arg0: i32) -> (i32, i32) {
    %c0_i32 = arith.constant 0 : i32
    %c0_i32_0 = arith.constant 0 : i32
    %c0_i32_1 = arith.constant 0 : i32
    return %c0_i32, %c0_i32_0 : i32, i32
  }
  func.func @transform_4(%arg0: i32) -> (i32, i32) {
    %c0_i32 = arith.constant 0 : i32
    %c0_i32_0 = arith.constant 0 : i32
    %c0_i32_1 = arith.constant 0 : i32
    return %c0_i32, %c0_i32_0 : i32, i32
  }
  func.func @transform_5(%arg0: i32) -> (i32, i32) {
    %c0_i32 = arith.constant 0 : i32
    %c0_i32_0 = arith.constant 0 : i32
    %c0_i32_1 = arith.constant 0 : i32
    return %c0_i32, %c0_i32_0 : i32, i32
  }
  func.func @transform_6(%arg0: i32) -> (i32, i32) {
    %c0_i32 = arith.constant 0 : i32
    %c0_i32_0 = arith.constant 0 : i32
    %c0_i32_1 = arith.constant 0 : i32
    return %c0_i32, %c0_i32_0 : i32, i32
  }
  func.func @transform_7(%arg0: i32) -> (i32, i32) {
    %c0_i32 = arith.constant 0 : i32
    %c0_i32_0 = arith.constant 0 : i32
    return %arg0, %c0_i32 : i32, i32
  }
}

</mosaic_0001>

<llo_original>
// kernel: tpu_custom_call.1
$region0: #{tpu_custom_call.1}
  #allocation0 [shape = 'u32[]', space=smem, size = 0x4, offset = 0x4, fixed_abs, tag = 'smem constant byte address 0x4 - core index']
  #allocation1 [shape = 'u32[144,128]{1,0:T(1,128)}', space=vmem, size = 0x12000, scoped, tag = 'internal scratch']
  %s0 = inlined_call_operand.vmem [shape: f32[16,8], index: 0, kind: input, shape index: {}]
  %s1 = inlined_call_operand.vmem [shape: f32[8,128], index: 1, kind: input, shape index: {}]
  %s2 = inlined_call_operand.vmem [shape: f32[1,128], index: 2, kind: input, shape index: {}]
  %s3 = inlined_call_operand.vmem [shape: f32[128,128], index: 3, kind: input, shape index: {}]
  %s4 = inlined_call_operand.vmem [shape: f32[1,128], index: 4, kind: input, shape index: {}]
  %s5 = inlined_call_operand.vmem [shape: f32[128,4], index: 5, kind: input, shape index: {}]
  %s6 = inlined_call_operand.vmem [shape: f32[1,4], index: 6, kind: input, shape index: {}]
  %s7 = inlined_call_operand.vmem [shape: f32[16,4], index: 7, kind: output, shape index: {}]
  %s8 = sld [smem:[#allocation0]]
  $region61: #{tpu_custom_call.1} parent=0
    _
  %s10 = ssub.s32 1, %s8
  %s11 = scalar_select 0, %s10, %s8
  loop: start=0, step=1, limit=4
  $region2: #{tpu_custom_call.1} parent=0 // loop_pre_header
    _
  $region3: #{tpu_custom_call.1} parent=0 // loop_header
    %s13 = sphi 0, %s17
    %p14 = scmp.ge.s32.totalorder %s13, 4
    %s23 = sphi 0, %s25
    %s26 = sphi 0, %s23
    %s27 = sphi 0, %s26
    %s43 = sphi 0, %s27
    %s47 = sphi 0, %s47
    %s49 = sphi 0, %s47
    %s50 = sphi 0, %s49
    %s64 = sphi 0, %s50
    %s68 = sphi 0, %s68
    %s70 = sphi 0, %s68
    %s71 = sphi 0, %s70
    %s85 = sphi 0, %s71
    %s89 = sphi 0, %s89
    %s91 = sphi 0, %s89
    %s92 = sphi 0, %s91
    %s106 = sphi 0, %s92
    %s110 = sphi 0, %s110
    %s112 = sphi 0, %s110
    %s113 = sphi 0, %s112
    %s127 = sphi 0, %s113
    %s131 = sphi 0, %s131
    %s133 = sphi 0, %s131
    %s134 = sphi 0, %s133
    %s148 = sphi 0, %s134
    %s152 = sphi 0, %s152
    %s154 = sphi 0, %s152
    %s155 = sphi 0, %s154
    %s169 = sphi 0, %s155
    %s175 = sphi 0, %s177
    %s178 = sphi 0, %s175
    %s179 = sphi 0, %s178
    %s195 = sphi 0, %s179
  $region4: #{tpu_custom_call.1} parent=0 // loop_header_branch
    %16 = sbr.rel (%p14) target = $region8
  $region5: #{tpu_custom_call.1} parent=0 // loop_body
    %s18 = ssub.s32 %s13, 1
    %s19 = ssub.s32 %s13, 2
    %s20 = sadd.s32 %s13, 1
    %s21 = ssub.s32 %s13, %s20
    %p22 = scmp.eq.s32.totalorder %s21, 0
    %s24 = sadd.s32 %s23, 1
    %s25 = scalar_select %p22, %s23, %s24
    %p28 = pneg %p22
    %p29 = scmp.eq.s32.totalorder %s13, 1
    %p30 = por %p28, %p29
    %p31 = scmp.ne.s32.totalorder %s23, %s26
    %p32 = scmp.eq.s32.totalorder %s13, 0
    %p33 = por %p31, %p32
    %p34 = scmp.ne.s32.totalorder %s23, %s26
    %p35 = scmp.eq.s32.totalorder %s18, 1
    %p36 = por %p34, %p35
    %p37 = scmp.ne.s32.totalorder %s26, %s27
    %p38 = scmp.eq.s32.totalorder %s18, 0
    %p39 = por %p37, %p38
    %p40 = scmp.ne.s32.totalorder %s26, %s27
    %p41 = scmp.eq.s32.totalorder %s19, 1
    %p42 = por %p40, %p41
    %p44 = scmp.ne.s32.totalorder %s27, %s43
    %p45 = scmp.eq.s32.totalorder %s19, 0
    %p46 = por %p44, %p45
    %s48 = sadd.s32 %s47, 1
    %p51 = scmp.eq.s32.totalorder %s13, 1
    %p52 = scmp.ne.s32.totalorder %s47, %s49
    %p53 = scmp.eq.s32.totalorder %s13, 0
    %p54 = por %p52, %p53
    %p55 = scmp.ne.s32.totalorder %s47, %s49
    %p56 = scmp.eq.s32.totalorder %s18, 1
    %p57 = por %p55, %p56
    %p58 = scmp.ne.s32.totalorder %s49, %s50
    %p59 = scmp.eq.s32.totalorder %s18, 0
    %p60 = por %p58, %p59
    %p61 = scmp.ne.s32.totalorder %s49, %s50
    %p62 = scmp.eq.s32.totalorder %s19, 1
    %p63 = por %p61, %p62
    %p65 = scmp.ne.s32.totalorder %s50, %s64
    %p66 = scmp.eq.s32.totalorder %s19, 0
    %p67 = por %p65, %p66
    %s69 = sadd.s32 %s68, 1
    %p72 = scmp.eq.s32.totalorder %s13, 1
    %p73 = scmp.ne.s32.totalorder %s68, %s70
    %p74 = scmp.eq.s32.totalorder %s13, 0
    %p75 = por %p73, %p74
    %p76 = scmp.ne.s32.totalorder %s68, %s70
    %p77 = scmp.eq.s32.totalorder %s18, 1
    %p78 = por %p76, %p77
    %p79 = scmp.ne.s32.totalorder %s70, %s71
    %p80 = scmp.eq.s32.totalorder %s18, 0
    %p81 = por %p79, %p80
    %p82 = scmp.ne.s32.totalorder %s70, %s71
    %p83 = scmp.eq.s32.totalorder %s19, 1
    %p84 = por %p82, %p83
    %p86 = scmp.ne.s32.totalorder %s71, %s85
    %p87 = scmp.eq.s32.totalorder %s19, 0
    %p88 = por %p86, %p87
    %s90 = sadd.s32 %s89, 1
    %p93 = scmp.eq.s32.totalorder %s13, 1
    %p94 = scmp.ne.s32.totalorder %s89, %s91
    %p95 = scmp.eq.s32.totalorder %s13, 0
    %p96 = por %p94, %p95
    %p97 = scmp.ne.s32.totalorder %s89, %s91
    %p98 = scmp.eq.s32.totalorder %s18, 1
    %p99 = por %p97, %p98
    %p100 = scmp.ne.s32.totalorder %s91, %s92
    %p101 = scmp.eq.s32.totalorder %s18, 0
    %p102 = por %p100, %p101
    %p103 = scmp.ne.s32.totalorder %s91, %s92
    %p104 = scmp.eq.s32.totalorder %s19, 1
    %p105 = por %p103, %p104
    %p107 = scmp.ne.s32.totalorder %s92, %s106
    %p108 = scmp.eq.s32.totalorder %s19, 0
    %p109 = por %p107, %p108
    %s111 = sadd.s32 %s110, 1
    %p114 = scmp.eq.s32.totalorder %s13, 1
    %p115 = scmp.ne.s32.totalorder %s110, %s112
    %p116 = scmp.eq.s32.totalorder %s13, 0
    %p117 = por %p115, %p116
    %p118 = scmp.ne.s32.totalorder %s110, %s112
    %p119 = scmp.eq.s32.totalorder %s18, 1
    %p120 = por %p118, %p119
    %p121 = scmp.ne.s32.totalorder %s112, %s113
    %p122 = scmp.eq.s32.totalorder %s18, 0
    %p123 = por %p121, %p122
    %p124 = scmp.ne.s32.totalorder %s112, %s113
    %p125 = scmp.eq.s32.totalorder %s19, 1
    %p126 = por %p124, %p125
    %p128 = scmp.ne.s32.totalorder %s113, %s127
    %p129 = scmp.eq.s32.totalorder %s19, 0
    %p130 = por %p128, %p129
    %s132 = sadd.s32 %s131, 1
    %p135 = scmp.eq.s32.totalorder %s13, 1
    %p136 = scmp.ne.s32.totalorder %s131, %s133
    %p137 = scmp.eq.s32.totalorder %s13, 0
    %p138 = por %p136, %p137
    %p139 = scmp.ne.s32.totalorder %s131, %s133
    %p140 = scmp.eq.s32.totalorder %s18, 1
    %p141 = por %p139, %p140
    %p142 = scmp.ne.s32.totalorder %s133, %s134
    %p143 = scmp.eq.s32.totalorder %s18, 0
    %p144 = por %p142, %p143
    %p145 = scmp.ne.s32.totalorder %s133, %s134
    %p146 = scmp.eq.s32.totalorder %s19, 1
    %p147 = por %p145, %p146
    %p149 = scmp.ne.s32.totalorder %s134, %s148
    %p150 = scmp.eq.s32.totalorder %s19, 0
    %p151 = por %p149, %p150
    %s153 = sadd.s32 %s152, 1
    %p156 = scmp.eq.s32.totalorder %s13, 1
    %p157 = scmp.ne.s32.totalorder %s152, %s154
    %p158 = scmp.eq.s32.totalorder %s13, 0
    %p159 = por %p157, %p158
    %p160 = scmp.ne.s32.totalorder %s152, %s154
    %p161 = scmp.eq.s32.totalorder %s18, 1
    %p162 = por %p160, %p161
    %p163 = scmp.ne.s32.totalorder %s154, %s155
    %p164 = scmp.eq.s32.totalorder %s18, 0
    %p165 = por %p163, %p164
    %p166 = scmp.ne.s32.totalorder %s154, %s155
    %p167 = scmp.eq.s32.totalorder %s19, 1
    %p168 = por %p166, %p167
    %p170 = scmp.ne.s32.totalorder %s155, %s169
    %p171 = scmp.eq.s32.totalorder %s19, 0
    %p172 = por %p170, %p171
    %s173 = ssub.s32 %s13, %s20
    %p174 = scmp.eq.s32.totalorder %s173, 0
    %s176 = sadd.s32 %s175, 1
    %s177 = scalar_select %p174, %s175, %s176
    %p180 = pneg %p174
    %p181 = scmp.eq.s32.totalorder %s13, 1
    %p182 = por %p180, %p181
    %p183 = scmp.ne.s32.totalorder %s175, %s178
    %p184 = scmp.eq.s32.totalorder %s13, 0
    %p185 = por %p183, %p184
    %p186 = scmp.ne.s32.totalorder %s175, %s178
    %p187 = scmp.eq.s32.totalorder %s18, 1
    %p188 = por %p186, %p187
    %p189 = scmp.ne.s32.totalorder %s178, %s179
    %p190 = scmp.eq.s32.totalorder %s18, 0
    %p191 = por %p189, %p190
    %p192 = scmp.ne.s32.totalorder %s178, %s179
    %p193 = scmp.eq.s32.totalorder %s19, 1
    %p194 = por %p192, %p193
    %p196 = scmp.ne.s32.totalorder %s179, %s195
    %p197 = scmp.eq.s32.totalorder %s19, 0
    %p198 = por %p196, %p197
    %p199 = scmp.le.s32.totalorder 1, %s13
    %p200 = scmp.lt.s32.totalorder %s13, 3
    %p201 = pnand %p199, %p200
    %p202 = pneg %p201
    // Predicated region
    $region9: #{tpu_custom_call.1} parent=5 // pred_check
      _
    $region10: #{tpu_custom_call.1} parent=5 // pred_check_branch
      %204 = sbr.rel (%p201) target = $region12
    $region11: #{tpu_custom_call.1} parent=5 // pred_region
      %s205 = ssub.s32 %s13, 1
      // Predicated region
      $region13: #{tpu_custom_call.1} parent=11 // pred_check
        %p206 = pneg %p60
      $region14: #{tpu_custom_call.1} parent=11 // pred_check_branch
        %208 = sbr.rel (%p206) target = $region16
      $region15: #{tpu_custom_call.1} parent=11 // pred_region
        _
      $region16: #{tpu_custom_call.1} parent=11 // pred_fallthru
        _
      // Predicated region
      $region17: #{tpu_custom_call.1} parent=11 // pred_check
        %p209 = pneg %p81
      $region18: #{tpu_custom_call.1} parent=11 // pred_check_branch
        %211 = sbr.rel (%p209) target = $region20
      $region19: #{tpu_custom_call.1} parent=11 // pred_region
        _
      $region20: #{tpu_custom_call.1} parent=11 // pred_fallthru
        _
      // Predicated region
      $region21: #{tpu_custom_call.1} parent=11 // pred_check
        %p212 = pneg %p102
      $region22: #{tpu_custom_call.1} parent=11 // pred_check_branch
        %214 = sbr.rel (%p212) target = $region24
      $region23: #{tpu_custom_call.1} parent=11 // pred_region
        _
      $region24: #{tpu_custom_call.1} parent=11 // pred_fallthru
        _
      // Predicated region
      $region25: #{tpu_custom_call.1} parent=11 // pred_check
        %p215 = pneg %p123
      $region26: #{tpu_custom_call.1} parent=11 // pred_check_branch
        %217 = sbr.rel (%p215) target = $region28
      $region27: #{tpu_custom_call.1} parent=11 // pred_region
        _
      $region28: #{tpu_custom_call.1} parent=11 // pred_fallthru
        _
      // Predicated region
      $region29: #{tpu_custom_call.1} parent=11 // pred_check
        %p218 = pneg %p144
      $region30: #{tpu_custom_call.1} parent=11 // pred_check_branch
        %220 = sbr.rel (%p218) target = $region32
      $region31: #{tpu_custom_call.1} parent=11 // pred_region
        _
      $region32: #{tpu_custom_call.1} parent=11 // pred_fallthru
        _
      // Predicated region
      $region33: #{tpu_custom_call.1} parent=11 // pred_check
        %p221 = pneg %p165
      $region34: #{tpu_custom_call.1} parent=11 // pred_check_branch
        %223 = sbr.rel (%p221) target = $region36
      $region35: #{tpu_custom_call.1} parent=11 // pred_region
        _
      $region36: #{tpu_custom_call.1} parent=11 // pred_fallthru
        _
    $region12: #{tpu_custom_call.1} parent=5 // pred_fallthru
      _
    %p224 = scmp.lt.s32.totalorder %s13, 2
    // Predicated region
    $region37: #{tpu_custom_call.1} parent=5 // pred_check
      %p225 = pneg %p224
    $region38: #{tpu_custom_call.1} parent=5 // pred_check_branch
      %227 = sbr.rel (%p225) target = $region40
    $region39: #{tpu_custom_call.1} parent=5 // pred_region
      // Predicated region
      $region41: #{tpu_custom_call.1} parent=39 // pred_check
        %p228 = pneg %p33
      $region42: #{tpu_custom_call.1} parent=39 // pred_check_branch
        %230 = sbr.rel (%p228) target = $region44
      $region43: #{tpu_custom_call.1} parent=39 // pred_region
        %p231 = scmp.lt.s32.totalorder %s13, 1
        %s232 = scalar_select %p231, %s13, 1
        %s233 = smul.addr %s232, 8
        %s234 = scalar_lea.vmem %s0, %s233
      $region44: #{tpu_custom_call.1} parent=39 // pred_fallthru
        _
    $region40: #{tpu_custom_call.1} parent=5 // pred_fallthru
      _
    %p235 = scmp.le.s32.totalorder 1, %s13
    %p236 = scmp.lt.s32.totalorder %s13, 3
    %p237 = pnand %p235, %p236
    %p238 = pneg %p237
    // Predicated region
    $region45: #{tpu_custom_call.1} parent=5 // pred_check
      _
    $region46: #{tpu_custom_call.1} parent=5 // pred_check_branch
      %240 = sbr.rel (%p237) target = $region48
    $region47: #{tpu_custom_call.1} parent=5 // pred_region
      %s241 = ssub.s32 %s13, 1
      %p242 = scmp.lt.s32.totalorder %s18, 1
      %s243 = scalar_select %p242, %s18, 1
      %s244 = smul.addr %s243, 8
      %s245 = scalar_lea.vmem %s0, %s244
      %p246 = pneg %p39
      %p247 = pneg %p36
      %p248 = pneg %p60
      %p249 = pneg %p57
      %p250 = pneg %p81
      %p251 = pneg %p78
      %p252 = pneg %p102
      %p253 = pneg %p99
      %p254 = pneg %p123
      %p255 = pneg %p120
      %p256 = pneg %p144
      %p257 = pneg %p141
      %p258 = pneg %p165
      %p259 = pneg %p162
      %p260 = pneg %p191
      %p261 = pneg %p188
      %p262 = scmp.lt.s32.totalorder %s18, 1
      %s263 = scalar_select %p262, %s18, 1
      %s264 = smul.addr %s263, 8
      %s265 = scalar_lea.vmem %s7, %s264
      %p266 = scmp.lt.s32.totalorder %s18, 1
      %s267 = scalar_select %p266, %s18, 1
      %s268 = smul.addr %s267, 8
      %s269 = scalar_lea.vmem %s0, %s268
      %p270 = scmp.lt.s32.totalorder %s18, 1
      %s271 = scalar_select %p270, %s18, 1
      %s272 = smul.addr %s271, 8
      %s273 = scalar_lea.vmem %s7, %s272
      %v274 = vld [vmem:[%s269] sm:$0xff]
      %v275 = vld [vmem:[%s1] sm:$0xff]
      %v276 = vld [vmem:[%s2] sm:$0x1]
      %v278 = vlaneseq
      %v279 = vshrl.u32 %v278, 7
      %v280 = vsub.s32 0, %v279
      %v281 = vrot.slane %v276, %v280
      %vm283 = vcmask 64512
      %v285 = vsel %vm283, %v274, 0
      %287 = vmatprep.subr.mxu0 0.0
      %288 = vmatpush1.msra.mxu0 %v275
      %289 = vmatprep.subr.mxu0 0.0
      %290 = vmatpush1.msra.mxu0 0.0
      %291 = vmatprep.subr.mxu0 0.0
      %292 = vmatpush1.msra.mxu0 0.0
      %293 = vmatprep.subr.mxu0 0.0
      %294 = vmatpush1.msra.mxu0 0.0
      %295 = vmatprep.subr.mxu0 0.0
      %296 = vmatpush1.msra.mxu0 0.0
      %297 = vmatprep.subr.mxu0 0.0
      %298 = vmatpush1.msra.mxu0 0.0
      %299 = vmatprep.subr.mxu0 0.0
      %300 = vmatpush1.msra.mxu0 0.0
      %301 = vmatprep.subr.mxu0 0.0
      %302 = vmatpush1.msra.mxu0 0.0
      %303 = vmatprep.subr.mxu0 0.0
      %304 = vmatpush1.msra.mxu0 0.0
      %305 = vmatprep.subr.mxu0 0.0
      %306 = vmatpush1.msra.mxu0 0.0
      %307 = vmatprep.subr.mxu0 0.0
      %308 = vmatpush1.msra.mxu0 0.0
      %309 = vmatprep.subr.mxu0 0.0
      %310 = vmatpush1.msra.mxu0 0.0
      %311 = vmatprep.subr.mxu0 0.0
      %312 = vmatpush1.msra.mxu0 0.0
      %313 = vmatprep.subr.mxu0 0.0
      %314 = vmatpush1.msra.mxu0 0.0
      %315 = vmatprep.subr.mxu0 0.0
      %316 = vmatpush1.msra.mxu0 0.0
      %317 = vmatprep.subr.mxu0 0.0
      %318 = vmatpush1.msra.mxu0 0.0
      %319 = vmatprep.subr.mxu0 0.0
      %320 = vmatpush1.msra.mxu0 0.0
      %321 = vmatprep.subr.mxu0 0.0
      %322 = vmatpush1.msra.mxu0 0.0
      %323 = vmatprep.subr.mxu0 0.0
      %324 = vmatpush1.msra.mxu0 0.0
      %325 = vmatprep.subr.mxu0 0.0
      %326 = vmatpush1.msra.mxu0 0.0
      %327 = vmatprep.subr.mxu0 0.0
      %328 = vmatpush1.msra.mxu0 0.0
      %329 = vmatprep.subr.mxu0 0.0
      %330 = vmatpush1.msra.mxu0 0.0
      %331 = vmatprep.subr.mxu0 0.0
      %332 = vmatpush1.msra.mxu0 0.0
      %333 = vmatprep.subr.mxu0 0.0
      %334 = vmatpush1.msra.mxu0 0.0
      %335 = vmatprep.subr.mxu0 0.0
      %336 = vmatpush1.msra.mxu0 0.0
      %337 = vmatprep.subr.mxu0 0.0
      %338 = vmatpush1.msra.mxu0 0.0
      %339 = vmatprep.subr.mxu0 0.0
      %340 = vmatpush1.msra.mxu0 0.0
      %341 = vmatprep.subr.mxu0 0.0
      %342 = vmatpush1.msra.mxu0 0.0
      %343 = vmatprep.subr.mxu0 0.0
      %344 = vmatpush1.msra.mxu0 0.0
      %345 = vmatprep.subr.mxu0 0.0
      %346 = vmatpush1.msra.mxu0 0.0
      %347 = vmatprep.subr.mxu0 0.0
      %348 = vmatpush1.msra.mxu0 0.0
      %349 = vmatprep.subr.mxu0 0.0
      %350 = vmatpush1.msra.mxu0 0.0
      %351 = vmatprep.mubr.f32.mxu0 0.0
      %352 = vmatmul.mubr.f32.gmra.mrb[0].mxu0 %v285
      %v353 = vpop.f32.mrb[0].mxu0
      %v354 = vadd.f32 %v281, %v353
      %v355 = vpop.f32.mrb[0].mxu0
      %356 = vdwg.mxu0
      %v357 = vmax.f32 %v354, 0.0
      %v358 = vld [vmem:[%s3] sm:$0xff]
      %v359 = vld [vmem:[%s3 + $0x8] sm:$0xff]
      %v360 = vld [vmem:[%s3 + $0x10] sm:$0xff]
      %v361 = vld [vmem:[%s3 + $0x18] sm:$0xff]
      %v362 = vld [vmem:[%s3 + $0x20] sm:$0xff]
      %v363 = vld [vmem:[%s3 + $0x28] sm:$0xff]
      %v364 = vld [vmem:[%s3 + $0x30] sm:$0xff]
      %v365 = vld [vmem:[%s3 + $0x38] sm:$0xff]
      %v366 = vld [vmem:[%s3 + $0x40] sm:$0xff]
      %v367 = vld [vmem:[%s3 + $0x48] sm:$0xff]
      %v368 = vld [vmem:[%s3 + $0x50] sm:$0xff]
      %v369 = vld [vmem:[%s3 + $0x58] sm:$0xff]
      %v370 = vld [vmem:[%s3 + $0x60] sm:$0xff]
      %v371 = vld [vmem:[%s3 + $0x68] sm:$0xff]
      %v372 = vld [vmem:[%s3 + $0x70] sm:$0xff]
      %v373 = vld [vmem:[%s3 + $0x78] sm:$0xff]
      %v374 = vld [vmem:[%s4] sm:$0x1]
      %v376 = vlaneseq
      %v377 = vshrl.u32 %v376, 7
      %v378 = vsub.s32 0, %v377
      %v379 = vrot.slane %v374, %v378
      %381 = vmatprep.subr.mxu0 0.0
      %382 = vmatpush1.msra.mxu0 %v358
      %383 = vmatprep.subr.mxu0 0.0
      %384 = vmatpush1.msra.mxu0 %v359
      %385 = vmatprep.subr.mxu0 0.0
      %386 = vmatpush1.msra.mxu0 %v360
      %387 = vmatprep.subr.mxu0 0.0
      %388 = vmatpush1.msra.mxu0 %v361
      %389 = vmatprep.subr.mxu0 0.0
      %390 = vmatpush1.msra.mxu0 %v362
      %391 = vmatprep.subr.mxu0 0.0
      %392 = vmatpush1.msra.mxu0 %v363
      %393 = vmatprep.subr.mxu0 0.0
      %394 = vmatpush1.msra.mxu0 %v364
      %395 = vmatprep.subr.mxu0 0.0
      %396 = vmatpush1.msra.mxu0 %v365
      %397 = vmatprep.subr.mxu0 0.0
      %398 = vmatpush1.msra.mxu0 %v366
      %399 = vmatprep.subr.mxu0 0.0
      %400 = vmatpush1.msra.mxu0 %v367
      %401 = vmatprep.subr.mxu0 0.0
      %402 = vmatpush1.msra.mxu0 %v368
      %403 = vmatprep.subr.mxu0 0.0
      %404 = vmatpush1.msra.mxu0 %v369
      %405 = vmatprep.subr.mxu0 0.0
      %406 = vmatpush1.msra.mxu0 %v370
      %407 = vmatprep.subr.mxu0 0.0
      %408 = vmatpush1.msra.mxu0 %v371
      %409 = vmatprep.subr.mxu0 0.0
      %410 = vmatpush1.msra.mxu0 %v372
      %411 = vmatprep.subr.mxu0 0.0
      %412 = vmatpush1.msra.mxu0 %v373
      %413 = vmatprep.subr.mxu0 0.0
      %414 = vmatpush1.msra.mxu0 0.0
      %415 = vmatprep.subr.mxu0 0.0
      %416 = vmatpush1.msra.mxu0 0.0
      %417 = vmatprep.subr.mxu0 0.0
      %418 = vmatpush1.msra.mxu0 0.0
      %419 = vmatprep.subr.mxu0 0.0
      %420 = vmatpush1.msra.mxu0 0.0
      %421 = vmatprep.subr.mxu0 0.0
      %422 = vmatpush1.msra.mxu0 0.0
      %423 = vmatprep.subr.mxu0 0.0
      %424 = vmatpush1.msra.mxu0 0.0
      %425 = vmatprep.subr.mxu0 0.0
      %426 = vmatpush1.msra.mxu0 0.0
      %427 = vmatprep.subr.mxu0 0.0
      %428 = vmatpush1.msra.mxu0 0.0
      %429 = vmatprep.subr.mxu0 0.0
      %430 = vmatpush1.msra.mxu0 0.0
      %431 = vmatprep.subr.mxu0 0.0
      %432 = vmatpush1.msra.mxu0 0.0
      %433 = vmatprep.subr.mxu0 0.0
      %434 = vmatpush1.msra.mxu0 0.0
      %435 = vmatprep.subr.mxu0 0.0
      %436 = vmatpush1.msra.mxu0 0.0
      %437 = vmatprep.subr.mxu0 0.0
      %438 = vmatpush1.msra.mxu0 0.0
      %439 = vmatprep.subr.mxu0 0.0
      %440 = vmatpush1.msra.mxu0 0.0
      %441 = vmatprep.subr.mxu0 0.0
      %442 = vmatpush1.msra.mxu0 0.0
      %443 = vmatprep.subr.mxu0 0.0
      %444 = vmatpush1.msra.mxu0 0.0
      %445 = vmatprep.mubr.f32.mxu0 0.0
      %446 = vmatmul.mubr.f32.gmra.mrb[0].mxu0 %v357
      %v447 = vpop.f32.mrb[0].mxu0
      %v448 = vadd.f32 %v379, %v447
      %v449 = vpop.f32.mrb[0].mxu0
      %450 = vdwg.mxu0
      %v451 = vmax.f32 %v448, 0.0
      %v452 = vld [vmem:[%s5] sm:$0xff]
      %v453 = vld [vmem:[%s5 + $0x8] sm:$0xff]
      %v454 = vld [vmem:[%s5 + $0x10] sm:$0xff]
      %v455 = vld [vmem:[%s5 + $0x18] sm:$0xff]
      %v456 = vld [vmem:[%s5 + $0x20] sm:$0xff]
      %v457 = vld [vmem:[%s5 + $0x28] sm:$0xff]
      %v458 = vld [vmem:[%s5 + $0x30] sm:$0xff]
      %v459 = vld [vmem:[%s5 + $0x38] sm:$0xff]
      %v460 = vld [vmem:[%s5 + $0x40] sm:$0xff]
      %v461 = vld [vmem:[%s5 + $0x48] sm:$0xff]
      %v462 = vld [vmem:[%s5 + $0x50] sm:$0xff]
      %v463 = vld [vmem:[%s5 + $0x58] sm:$0xff]
      %v464 = vld [vmem:[%s5 + $0x60] sm:$0xff]
      %v465 = vld [vmem:[%s5 + $0x68] sm:$0xff]
      %v466 = vld [vmem:[%s5 + $0x70] sm:$0xff]
      %v467 = vld [vmem:[%s5 + $0x78] sm:$0xff]
      %v468 = vld [vmem:[%s6] sm:$0x1]
      %v470 = vlaneseq
      %v471 = vshrl.u32 %v470, 7
      %v472 = vsub.s32 0, %v471
      %v473 = vrot.slane %v468, %v472
      %475 = vmatprep.subr.mxu0 0.0
      %476 = vmatpush1.msra.mxu0 %v452
      %477 = vmatprep.subr.mxu0 0.0
      %478 = vmatpush1.msra.mxu0 %v453
      %479 = vmatprep.subr.mxu0 0.0
      %480 = vmatpush1.msra.mxu0 %v454
      %481 = vmatprep.subr.mxu0 0.0
      %482 = vmatpush1.msra.mxu0 %v455
      %483 = vmatprep.subr.mxu0 0.0
      %484 = vmatpush1.msra.mxu0 %v456
      %485 = vmatprep.subr.mxu0 0.0
      %486 = vmatpush1.msra.mxu0 %v457
      %487 = vmatprep.subr.mxu0 0.0
      %488 = vmatpush1.msra.mxu0 %v458
      %489 = vmatprep.subr.mxu0 0.0
      %490 = vmatpush1.msra.mxu0 %v459
      %491 = vmatprep.subr.mxu0 0.0
      %492 = vmatpush1.msra.mxu0 %v460
      %493 = vmatprep.subr.mxu0 0.0
      %494 = vmatpush1.msra.mxu0 %v461
      %495 = vmatprep.subr.mxu0 0.0
      %496 = vmatpush1.msra.mxu0 %v462
      %497 = vmatprep.subr.mxu0 0.0
      %498 = vmatpush1.msra.mxu0 %v463
      %499 = vmatprep.subr.mxu0 0.0
      %500 = vmatpush1.msra.mxu0 %v464
      %501 = vmatprep.subr.mxu0 0.0
      %502 = vmatpush1.msra.mxu0 %v465
      %503 = vmatprep.subr.mxu0 0.0
      %504 = vmatpush1.msra.mxu0 %v466
      %505 = vmatprep.subr.mxu0 0.0
      %506 = vmatpush1.msra.mxu0 %v467
      %507 = vmatprep.subr.mxu0 0.0
      %508 = vmatpush1.msra.mxu0 0.0
      %509 = vmatprep.subr.mxu0 0.0
      %510 = vmatpush1.msra.mxu0 0.0
      %511 = vmatprep.subr.mxu0 0.0
      %512 = vmatpush1.msra.mxu0 0.0
      %513 = vmatprep.subr.mxu0 0.0
      %514 = vmatpush1.msra.mxu0 0.0
      %515 = vmatprep.subr.mxu0 0.0
      %516 = vmatpush1.msra.mxu0 0.0
      %517 = vmatprep.subr.mxu0 0.0
      %518 = vmatpush1.msra.mxu0 0.0
      %519 = vmatprep.subr.mxu0 0.0
      %520 = vmatpush1.msra.mxu0 0.0
      %521 = vmatprep.subr.mxu0 0.0
      %522 = vmatpush1.msra.mxu0 0.0
      %523 = vmatprep.subr.mxu0 0.0
      %524 = vmatpush1.msra.mxu0 0.0
      %525 = vmatprep.subr.mxu0 0.0
      %526 = vmatpush1.msra.mxu0 0.0
      %527 = vmatprep.subr.mxu0 0.0
      %528 = vmatpush1.msra.mxu0 0.0
      %529 = vmatprep.subr.mxu0 0.0
      %530 = vmatpush1.msra.mxu0 0.0
      %531 = vmatprep.subr.mxu0 0.0
      %532 = vmatpush1.msra.mxu0 0.0
      %533 = vmatprep.subr.mxu0 0.0
      %534 = vmatpush1.msra.mxu0 0.0
      %535 = vmatprep.subr.mxu0 0.0
      %536 = vmatpush1.msra.mxu0 0.0
      %537 = vmatprep.subr.mxu0 0.0
      %538 = vmatpush1.msra.mxu0 0.0
      %539 = vmatprep.mubr.f32.mxu0 0.0
      %540 = vmatmul.mubr.f32.gmra.mrb[0].mxu0 %v451
      %v541 = vpop.f32.mrb[0].mxu0
      %v542 = vadd.f32 %v473, %v541
      %v543 = vpop.f32.mrb[0].mxu0
      %544 = vdwg.mxu0
      %vm545 = vcmask 31744
      %546 = vst.msk [vmem:[%s273] sm:$0xff] %vm545, %v542
      %p547 = scmp.lt.s32.totalorder %s18, 1
      %s548 = scalar_select %p547, %s18, 1
      %s549 = smul.addr %s548, 8
      %s550 = scalar_lea.vmem %s7, %s549
      // Predicated region
      $region49: #{tpu_custom_call.1} parent=47 // pred_check
        %p551 = pneg %p188
      $region50: #{tpu_custom_call.1} parent=47 // pred_check_branch
        %553 = sbr.rel (%p551) target = $region52
      $region51: #{tpu_custom_call.1} parent=47 // pred_region
        _
      $region52: #{tpu_custom_call.1} parent=47 // pred_fallthru
        _
    $region48: #{tpu_custom_call.1} parent=5 // pred_fallthru
      _
    %p554 = scmp.le.s32.totalorder 2, %s13
    // Predicated region
    $region53: #{tpu_custom_call.1} parent=5 // pred_check
      %p555 = pneg %p554
    $region54: #{tpu_custom_call.1} parent=5 // pred_check_branch
      %557 = sbr.rel (%p555) target = $region56
    $region55: #{tpu_custom_call.1} parent=5 // pred_region
      %s558 = ssub.s32 %s13, 2
      // Predicated region
      $region57: #{tpu_custom_call.1} parent=55 // pred_check
        %p559 = pneg %p194
      $region58: #{tpu_custom_call.1} parent=55 // pred_check_branch
        %561 = sbr.rel (%p559) target = $region60
      $region59: #{tpu_custom_call.1} parent=55 // pred_region
        %p562 = scmp.lt.s32.totalorder %s19, 1
        %s563 = scalar_select %p562, %s19, 1
        %s564 = smul.addr %s563, 8
        %s565 = scalar_lea.vmem %s7, %s564
      $region60: #{tpu_custom_call.1} parent=55 // pred_fallthru
        _
    $region56: #{tpu_custom_call.1} parent=5 // pred_fallthru
      _
  $region6: #{tpu_custom_call.1} parent=0 // loop_footer
    %s17 = sadd.s32 1, %s13
  $region7: #{tpu_custom_call.1} parent=0 // loop_footer_branch
    %12 = sbr.rel target = $region3
  $region8: #{tpu_custom_call.1} parent=0 // loop_exit
    _

// kernel: tpu_custom_call.1
$region0: #{tpu_custom_call.1}
  #allocation0 [shape = 'u32[]', space=smem, size = 0x4, offset = 0x4, fixed_abs, tag = 'smem constant byte address 0x4 - core index']
  #allocation1 [shape = 'u32[144,128]{1,0:T(1,128)}', space=vmem, size = 0x12000, scoped, tag = 'internal scratch']
  %s0 = inlined_call_operand.vmem [shape: f32[16,8], index: 0, kind: input, shape index: {}]
  %s1 = inlined_call_operand.vmem [shape: f32[8,128], index: 1, kind: input, shape index: {}]
  %s2 = inlined_call_operand.vmem [shape: f32[1,128], index: 2, kind: input, shape index: {}]
  %s3 = inlined_call_operand.vmem [shape: f32[128,128], index: 3, kind: input, shape index: {}]
  %s4 = inlined_call_operand.vmem [shape: f32[1,128], index: 4, kind: input, shape index: {}]
  %s5 = inlined_call_operand.vmem [shape: f32[128,4], index: 5, kind: input, shape index: {}]
  %s6 = inlined_call_operand.vmem [shape: f32[1,4], index: 6, kind: input, shape index: {}]
  %s7 = inlined_call_operand.vmem [shape: f32[16,4], index: 7, kind: output, shape index: {}]
  %s8 = sld [smem:[#allocation0]]
  $region61: #{tpu_custom_call.1} parent=0
    _
  %s10 = ssub.s32 1, %s8
  %s11 = scalar_select 0, %s10, %s8
  loop: start=0, step=1, limit=4
  $region2: #{tpu_custom_call.1} parent=0 // loop_pre_header
    _
  $region3: #{tpu_custom_call.1} parent=0 // loop_header
    %s13 = sphi 0, %s17
    %p14 = scmp.ge.s32.totalorder %s13, 4
    %s23 = sphi 0, %s25
    %s26 = sphi 0, %s23
    %s27 = sphi 0, %s26
    %s43 = sphi 0, %s27
    %s47 = sphi 0, %s47
    %s49 = sphi 0, %s47
    %s50 = sphi 0, %s49
    %s64 = sphi 0, %s50
    %s68 = sphi 0, %s68
    %s70 = sphi 0, %s68
    %s71 = sphi 0, %s70
    %s85 = sphi 0, %s71
    %s89 = sphi 0, %s89
    %s91 = sphi 0, %s89
    %s92 = sphi 0, %s91
    %s106 = sphi 0, %s92
    %s110 = sphi 0, %s110
    %s112 = sphi 0, %s110
    %s113 = sphi 0, %s112
    %s127 = sphi 0, %s113
    %s131 = sphi 0, %s131
    %s133 = sphi 0, %s131
    %s134 = sphi 0, %s133
    %s148 = sphi 0, %s134
    %s152 = sphi 0, %s152
    %s154 = sphi 0, %s152
    %s155 = sphi 0, %s154
    %s169 = sphi 0, %s155
    %s175 = sphi 0, %s177
    %s178 = sphi 0, %s175
    %s179 = sphi 0, %s178
    %s195 = sphi 0, %s179
  $region4: #{tpu_custom_call.1} parent=0 // loop_header_branch
    %16 = sbr.rel (%p14) target = $region8
  $region5: #{tpu_custom_call.1} parent=0 // loop_body
    %s18 = ssub.s32 %s13, 1
    %s19 = ssub.s32 %s13, 2
    %s20 = sadd.s32 %s13, 1
    %s21 = ssub.s32 %s13, %s20
    %p22 = scmp.eq.s32.totalorder %s21, 0
    %s24 = sadd.s32 %s23, 1
    %s25 = scalar_select %p22, %s23, %s24
    %p28 = pneg %p22
    %p29 = scmp.eq.s32.totalorder %s13, 1
    %p30 = por %p28, %p29
    %p31 = scmp.ne.s32.totalorder %s23, %s26
    %p32 = scmp.eq.s32.totalorder %s13, 0
    %p33 = por %p31, %p32
    %p34 = scmp.ne.s32.totalorder %s23, %s26
    %p35 = scmp.eq.s32.totalorder %s18, 1
    %p36 = por %p34, %p35
    %p37 = scmp.ne.s32.totalorder %s26, %s27
    %p38 = scmp.eq.s32.totalorder %s18, 0
    %p39 = por %p37, %p38
    %p40 = scmp.ne.s32.totalorder %s26, %s27
    %p41 = scmp.eq.s32.totalorder %s19, 1
    %p42 = por %p40, %p41
    %p44 = scmp.ne.s32.totalorder %s27, %s43
    %p45 = scmp.eq.s32.totalorder %s19, 0
    %p46 = por %p44, %p45
    %s48 = sadd.s32 %s47, 1
    %p51 = scmp.eq.s32.totalorder %s13, 1
    %p52 = scmp.ne.s32.totalorder %s47, %s49
    %p53 = scmp.eq.s32.totalorder %s13, 0
    %p54 = por %p52, %p53
    %p55 = scmp.ne.s32.totalorder %s47, %s49
    %p56 = scmp.eq.s32.totalorder %s18, 1
    %p57 = por %p55, %p56
    %p58 = scmp.ne.s32.totalorder %s49, %s50
    %p59 = scmp.eq.s32.totalorder %s18, 0
    %p60 = por %p58, %p59
    %p61 = scmp.ne.s32.totalorder %s49, %s50
    %p62 = scmp.eq.s32.totalorder %s19, 1
    %p63 = por %p61, %p62
    %p65 = scmp.ne.s32.totalorder %s50, %s64
    %p66 = scmp.eq.s32.totalorder %s19, 0
    %p67 = por %p65, %p66
    %s69 = sadd.s32 %s68, 1
    %p72 = scmp.eq.s32.totalorder %s13, 1
    %p73 = scmp.ne.s32.totalorder %s68, %s70
    %p74 = scmp.eq.s32.totalorder %s13, 0
    %p75 = por %p73, %p74
    %p76 = scmp.ne.s32.totalorder %s68, %s70
    %p77 = scmp.eq.s32.totalorder %s18, 1
    %p78 = por %p76, %p77
    %p79 = scmp.ne.s32.totalorder %s70, %s71
    %p80 = scmp.eq.s32.totalorder %s18, 0
    %p81 = por %p79, %p80
    %p82 = scmp.ne.s32.totalorder %s70, %s71
    %p83 = scmp.eq.s32.totalorder %s19, 1
    %p84 = por %p82, %p83
    %p86 = scmp.ne.s32.totalorder %s71, %s85
    %p87 = scmp.eq.s32.totalorder %s19, 0
    %p88 = por %p86, %p87
    %s90 = sadd.s32 %s89, 1
    %p93 = scmp.eq.s32.totalorder %s13, 1
    %p94 = scmp.ne.s32.totalorder %s89, %s91
    %p95 = scmp.eq.s32.totalorder %s13, 0
    %p96 = por %p94, %p95
    %p97 = scmp.ne.s32.totalorder %s89, %s91
    %p98 = scmp.eq.s32.totalorder %s18, 1
    %p99 = por %p97, %p98
    %p100 = scmp.ne.s32.totalorder %s91, %s92
    %p101 = scmp.eq.s32.totalorder %s18, 0
    %p102 = por %p100, %p101
    %p103 = scmp.ne.s32.totalorder %s91, %s92
    %p104 = scmp.eq.s32.totalorder %s19, 1
    %p105 = por %p103, %p104
    %p107 = scmp.ne.s32.totalorder %s92, %s106
    %p108 = scmp.eq.s32.totalorder %s19, 0
    %p109 = por %p107, %p108
    %s111 = sadd.s32 %s110, 1
    %p114 = scmp.eq.s32.totalorder %s13, 1
    %p115 = scmp.ne.s32.totalorder %s110, %s112
    %p116 = scmp.eq.s32.totalorder %s13, 0
    %p117 = por %p115, %p116
    %p118 = scmp.ne.s32.totalorder %s110, %s112
    %p119 = scmp.eq.s32.totalorder %s18, 1
    %p120 = por %p118, %p119
    %p121 = scmp.ne.s32.totalorder %s112, %s113
    %p122 = scmp.eq.s32.totalorder %s18, 0
    %p123 = por %p121, %p122
    %p124 = scmp.ne.s32.totalorder %s112, %s113
    %p125 = scmp.eq.s32.totalorder %s19, 1
    %p126 = por %p124, %p125
    %p128 = scmp.ne.s32.totalorder %s113, %s127
    %p129 = scmp.eq.s32.totalorder %s19, 0
    %p130 = por %p128, %p129
    %s132 = sadd.s32 %s131, 1
    %p135 = scmp.eq.s32.totalorder %s13, 1
    %p136 = scmp.ne.s32.totalorder %s131, %s133
    %p137 = scmp.eq.s32.totalorder %s13, 0
    %p138 = por %p136, %p137
    %p139 = scmp.ne.s32.totalorder %s131, %s133
    %p140 = scmp.eq.s32.totalorder %s18, 1
    %p141 = por %p139, %p140
    %p142 = scmp.ne.s32.totalorder %s133, %s134
    %p143 = scmp.eq.s32.totalorder %s18, 0
    %p144 = por %p142, %p143
    %p145 = scmp.ne.s32.totalorder %s133, %s134
    %p146 = scmp.eq.s32.totalorder %s19, 1
    %p147 = por %p145, %p146
    %p149 = scmp.ne.s32.totalorder %s134, %s148
    %p150 = scmp.eq.s32.totalorder %s19, 0
    %p151 = por %p149, %p150
    %s153 = sadd.s32 %s152, 1
    %p156 = scmp.eq.s32.totalorder %s13, 1
    %p157 = scmp.ne.s32.totalorder %s152, %s154
    %p158 = scmp.eq.s32.totalorder %s13, 0
    %p159 = por %p157, %p158
    %p160 = scmp.ne.s32.totalorder %s152, %s154
    %p161 = scmp.eq.s32.totalorder %s18, 1
    %p162 = por %p160, %p161
    %p163 = scmp.ne.s32.totalorder %s154, %s155
    %p164 = scmp.eq.s32.totalorder %s18, 0
    %p165 = por %p163, %p164
    %p166 = scmp.ne.s32.totalorder %s154, %s155
    %p167 = scmp.eq.s32.totalorder %s19, 1
    %p168 = por %p166, %p167
    %p170 = scmp.ne.s32.totalorder %s155, %s169
    %p171 = scmp.eq.s32.totalorder %s19, 0
    %p172 = por %p170, %p171
    %s173 = ssub.s32 %s13, %s20
    %p174 = scmp.eq.s32.totalorder %s173, 0
    %s176 = sadd.s32 %s175, 1
    %s177 = scalar_select %p174, %s175, %s176
    %p180 = pneg %p174
    %p181 = scmp.eq.s32.totalorder %s13, 1
    %p182 = por %p180, %p181
    %p183 = scmp.ne.s32.totalorder %s175, %s178
    %p184 = scmp.eq.s32.totalorder %s13, 0
    %p185 = por %p183, %p184
    %p186 = scmp.ne.s32.totalorder %s175, %s178
    %p187 = scmp.eq.s32.totalorder %s18, 1
    %p188 = por %p186, %p187
    %p189 = scmp.ne.s32.totalorder %s178, %s179
    %p190 = scmp.eq.s32.totalorder %s18, 0
    %p191 = por %p189, %p190
    %p192 = scmp.ne.s32.totalorder %s178, %s179
    %p193 = scmp.eq.s32.totalorder %s19, 1
    %p194 = por %p192, %p193
    %p196 = scmp.ne.s32.totalorder %s179, %s195
    %p197 = scmp.eq.s32.totalorder %s19, 0
    %p198 = por %p196, %p197
    %p199 = scmp.le.s32.totalorder 1, %s13
    %p200 = scmp.lt.s32.totalorder %s13, 3
    %p201 = pnand %p199, %p200
    %p202 = pneg %p201
    // Predicated region
    $region9: #{tpu_custom_call.1} parent=5 // pred_check
      _
    $region10: #{tpu_custom_call.1} parent=5 // pred_check_branch
      %204 = sbr.rel (%p201) target = $region12
    $region11: #{tpu_custom_call.1} parent=5 // pred_region
      %s205 = ssub.s32 %s13, 1
      // Predicated region
      $region13: #{tpu_custom_call.1} parent=11 // pred_check
        %p206 = pneg %p60
      $region14: #{tpu_custom_call.1} parent=11 // pred_check_branch
        %208 = sbr.rel (%p206) target = $region16
      $region15: #{tpu_custom_call.1} parent=11 // pred_region
        _
      $region16: #{tpu_custom_call.1} parent=11 // pred_fallthru
        _
      // Predicated region
      $region17: #{tpu_custom_call.1} parent=11 // pred_check
        %p209 = pneg %p81
      $region18: #{tpu_custom_call.1} parent=11 // pred_check_branch
        %211 = sbr.rel (%p209) target = $region20
      $region19: #{tpu_custom_call.1} parent=11 // pred_region
        _
      $region20: #{tpu_custom_call.1} parent=11 // pred_fallthru
        _
      // Predicated region
      $region21: #{tpu_custom_call.1} parent=11 // pred_check
        %p212 = pneg %p102
      $region22: #{tpu_custom_call.1} parent=11 // pred_check_branch
        %214 = sbr.rel (%p212) target = $region24
      $region23: #{tpu_custom_call.1} parent=11 // pred_region
        _
      $region24: #{tpu_custom_call.1} parent=11 // pred_fallthru
        _
      // Predicated region
      $region25: #{tpu_custom_call.1} parent=11 // pred_check
        %p215 = pneg %p123
      $region26: #{tpu_custom_call.1} parent=11 // pred_check_branch
        %217 = sbr.rel (%p215) target = $region28
      $region27: #{tpu_custom_call.1} parent=11 // pred_region
        _
      $region28: #{tpu_custom_call.1} parent=11 // pred_fallthru
        _
      // Predicated region
      $region29: #{tpu_custom_call.1} parent=11 // pred_check
        %p218 = pneg %p144
      $region30: #{tpu_custom_call.1} parent=11 // pred_check_branch
        %220 = sbr.rel (%p218) target = $region32
      $region31: #{tpu_custom_call.1} parent=11 // pred_region
        _
      $region32: #{tpu_custom_call.1} parent=11 // pred_fallthru
        _
      // Predicated region
      $region33: #{tpu_custom_call.1} parent=11 // pred_check
        %p221 = pneg %p165
      $region34: #{tpu_custom_call.1} parent=11 // pred_check_branch
        %223 = sbr.rel (%p221) target = $region36
      $region35: #{tpu_custom_call.1} parent=11 // pred_region
        _
      $region36: #{tpu_custom_call.1} parent=11 // pred_fallthru
        _
    $region12: #{tpu_custom_call.1} parent=5 // pred_fallthru
      _
    %p224 = scmp.lt.s32.totalorder %s13, 2
    // Predicated region
    $region37: #{tpu_custom_call.1} parent=5 // pred_check
      %p225 = pneg %p224
    $region38: #{tpu_custom_call.1} parent=5 // pred_check_branch
      %227 = sbr.rel (%p225) target = $region40
    $region39: #{tpu_custom_call.1} parent=5 // pred_region
      // Predicated region
      $region41: #{tpu_custom_call.1} parent=39 // pred_check
        %p228 = pneg %p33
      $region42: #{tpu_custom_call.1} parent=39 // pred_check_branch
        %230 = sbr.rel (%p228) target = $region44
      $region43: #{tpu_custom_call.1} parent=39 // pred_region
        %p231 = scmp.lt.s32.totalorder %s13, 1
        %s232 = scalar_select %p231, %s13, 1
        %s233 = smul.addr %s232, 8
        %s234 = scalar_lea.vmem %s0, %s233
      $region44: #{tpu_custom_call.1} parent=39 // pred_fallthru
        _
    $region40: #{tpu_custom_call.1} parent=5 // pred_fallthru
      _
    %p235 = scmp.le.s32.totalorder 1, %s13
    %p236 = scmp.lt.s32.totalorder %s13, 3
    %p237 = pnand %p235, %p236
    %p238 = pneg %p237
    // Predicated region
    $region45: #{tpu_custom_call.1} parent=5 // pred_check
      _
    $region46: #{tpu_custom_call.1} parent=5 // pred_check_branch
      %240 = sbr.rel (%p237) target = $region48
    $region47: #{tpu_custom_call.1} parent=5 // pred_region
      %s241 = ssub.s32 %s13, 1
      %p242 = scmp.lt.s32.totalorder %s18, 1
      %s243 = scalar_select %p242, %s18, 1
      %s244 = smul.addr %s243, 8
      %s245 = scalar_lea.vmem %s0, %s244
      %p246 = pneg %p39
      %p247 = pneg %p36
      %p248 = pneg %p60
      %p249 = pneg %p57
      %p250 = pneg %p81
      %p251 = pneg %p78
      %p252 = pneg %p102
      %p253 = pneg %p99
      %p254 = pneg %p123
      %p255 = pneg %p120
      %p256 = pneg %p144
      %p257 = pneg %p141
      %p258 = pneg %p165
      %p259 = pneg %p162
      %p260 = pneg %p191
      %p261 = pneg %p188
      %p262 = scmp.lt.s32.totalorder %s18, 1
      %s263 = scalar_select %p262, %s18, 1
      %s264 = smul.addr %s263, 8
      %s265 = scalar_lea.vmem %s7, %s264
      %p266 = scmp.lt.s32.totalorder %s18, 1
      %s267 = scalar_select %p266, %s18, 1
      %s268 = smul.addr %s267, 8
      %s269 = scalar_lea.vmem %s0, %s268
      %p270 = scmp.lt.s32.totalorder %s18, 1
      %s271 = scalar_select %p270, %s18, 1
      %s272 = smul.addr %s271, 8
      %s273 = scalar_lea.vmem %s7, %s272
      %v274 = vld [vmem:[%s269] sm:$0xff]
      %v275 = vld [vmem:[%s1] sm:$0xff]
      %v276 = vld [vmem:[%s2] sm:$0x1]
      %v278 = vlaneseq
      %v279 = vshrl.u32 %v278, 7
      %v280 = vsub.s32 0, %v279
      %v281 = vrot.slane %v276, %v280
      %vm283 = vcmask 64512
      %v285 = vsel %vm283, %v274, 0
      %287 = vmatprep.subr.mxu0 0.0
      %288 = vmatpush1.msra.mxu0 %v275
      %289 = vmatprep.subr.mxu0 0.0
      %290 = vmatpush1.msra.mxu0 0.0
      %291 = vmatprep.subr.mxu0 0.0
      %292 = vmatpush1.msra.mxu0 0.0
      %293 = vmatprep.subr.mxu0 0.0
      %294 = vmatpush1.msra.mxu0 0.0
      %295 = vmatprep.subr.mxu0 0.0
      %296 = vmatpush1.msra.mxu0 0.0
      %297 = vmatprep.subr.mxu0 0.0
      %298 = vmatpush1.msra.mxu0 0.0
      %299 = vmatprep.subr.mxu0 0.0
      %300 = vmatpush1.msra.mxu0 0.0
      %301 = vmatprep.subr.mxu0 0.0
      %302 = vmatpush1.msra.mxu0 0.0
      %303 = vmatprep.subr.mxu0 0.0
      %304 = vmatpush1.msra.mxu0 0.0
      %305 = vmatprep.subr.mxu0 0.0
      %306 = vmatpush1.msra.mxu0 0.0
      %307 = vmatprep.subr.mxu0 0.0
      %308 = vmatpush1.msra.mxu0 0.0
      %309 = vmatprep.subr.mxu0 0.0
      %310 = vmatpush1.msra.mxu0 0.0
      %311 = vmatprep.subr.mxu0 0.0
      %312 = vmatpush1.msra.mxu0 0.0
      %313 = vmatprep.subr.mxu0 0.0
      %314 = vmatpush1.msra.mxu0 0.0
      %315 = vmatprep.subr.mxu0 0.0
      %316 = vmatpush1.msra.mxu0 0.0
      %317 = vmatprep.subr.mxu0 0.0
      %318 = vmatpush1.msra.mxu0 0.0
      %319 = vmatprep.subr.mxu0 0.0
      %320 = vmatpush1.msra.mxu0 0.0
      %321 = vmatprep.subr.mxu0 0.0
      %322 = vmatpush1.msra.mxu0 0.0
      %323 = vmatprep.subr.mxu0 0.0
      %324 = vmatpush1.msra.mxu0 0.0
      %325 = vmatprep.subr.mxu0 0.0
      %326 = vmatpush1.msra.mxu0 0.0
      %327 = vmatprep.subr.mxu0 0.0
      %328 = vmatpush1.msra.mxu0 0.0
      %329 = vmatprep.subr.mxu0 0.0
      %330 = vmatpush1.msra.mxu0 0.0
      %331 = vmatprep.subr.mxu0 0.0
      %332 = vmatpush1.msra.mxu0 0.0
      %333 = vmatprep.subr.mxu0 0.0
      %334 = vmatpush1.msra.mxu0 0.0
      %335 = vmatprep.subr.mxu0 0.0
      %336 = vmatpush1.msra.mxu0 0.0
      %337 = vmatprep.subr.mxu0 0.0
      %338 = vmatpush1.msra.mxu0 0.0
      %339 = vmatprep.subr.mxu0 0.0
      %340 = vmatpush1.msra.mxu0 0.0
      %341 = vmatprep.subr.mxu0 0.0
      %342 = vmatpush1.msra.mxu0 0.0
      %343 = vmatprep.subr.mxu0 0.0
      %344 = vmatpush1.msra.mxu0 0.0
      %345 = vmatprep.subr.mxu0 0.0
      %346 = vmatpush1.msra.mxu0 0.0
      %347 = vmatprep.subr.mxu0 0.0
      %348 = vmatpush1.msra.mxu0 0.0
      %349 = vmatprep.subr.mxu0 0.0
      %350 = vmatpush1.msra.mxu0 0.0
      %351 = vmatprep.mubr.f32.mxu0 0.0
      %352 = vmatmul.mubr.f32.gmra.mrb[0].mxu0 %v285
      %v353 = vpop.f32.mrb[0].mxu0
      %v354 = vadd.f32 %v281, %v353
      %v355 = vpop.f32.mrb[0].mxu0
      %356 = vdwg.mxu0
      %v357 = vmax.f32 %v354, 0.0
      %v358 = vld [vmem:[%s3] sm:$0xff]
      %v359 = vld [vmem:[%s3 + $0x8] sm:$0xff]
      %v360 = vld [vmem:[%s3 + $0x10] sm:$0xff]
      %v361 = vld [vmem:[%s3 + $0x18] sm:$0xff]
      %v362 = vld [vmem:[%s3 + $0x20] sm:$0xff]
      %v363 = vld [vmem:[%s3 + $0x28] sm:$0xff]
      %v364 = vld [vmem:[%s3 + $0x30] sm:$0xff]
      %v365 = vld [vmem:[%s3 + $0x38] sm:$0xff]
      %v366 = vld [vmem:[%s3 + $0x40] sm:$0xff]
      %v367 = vld [vmem:[%s3 + $0x48] sm:$0xff]
      %v368 = vld [vmem:[%s3 + $0x50] sm:$0xff]
      %v369 = vld [vmem:[%s3 + $0x58] sm:$0xff]
      %v370 = vld [vmem:[%s3 + $0x60] sm:$0xff]
      %v371 = vld [vmem:[%s3 + $0x68] sm:$0xff]
      %v372 = vld [vmem:[%s3 + $0x70] sm:$0xff]
      %v373 = vld [vmem:[%s3 + $0x78] sm:$0xff]
      %v374 = vld [vmem:[%s4] sm:$0x1]
      %v376 = vlaneseq
      %v377 = vshrl.u32 %v376, 7
      %v378 = vsub.s32 0, %v377
      %v379 = vrot.slane %v374, %v378
      %381 = vmatprep.subr.mxu0 0.0
      %382 = vmatpush1.msra.mxu0 %v358
      %383 = vmatprep.subr.mxu0 0.0
      %384 = vmatpush1.msra.mxu0 %v359
      %385 = vmatprep.subr.mxu0 0.0
      %386 = vmatpush1.msra.mxu0 %v360
      %387 = vmatprep.subr.mxu0 0.0
      %388 = vmatpush1.msra.mxu0 %v361
      %389 = vmatprep.subr.mxu0 0.0
      %390 = vmatpush1.msra.mxu0 %v362
      %391 = vmatprep.subr.mxu0 0.0
      %392 = vmatpush1.msra.mxu0 %v363
      %393 = vmatprep.subr.mxu0 0.0
      %394 = vmatpush1.msra.mxu0 %v364
      %395 = vmatprep.subr.mxu0 0.0
      %396 = vmatpush1.msra.mxu0 %v365
      %397 = vmatprep.subr.mxu0 0.0
      %398 = vmatpush1.msra.mxu0 %v366
      %399 = vmatprep.subr.mxu0 0.0
      %400 = vmatpush1.msra.mxu0 %v367
      %401 = vmatprep.subr.mxu0 0.0
      %402 = vmatpush1.msra.mxu0 %v368
      %403 = vmatprep.subr.mxu0 0.0
      %404 = vmatpush1.msra.mxu0 %v369
      %405 = vmatprep.subr.mxu0 0.0
      %406 = vmatpush1.msra.mxu0 %v370
      %407 = vmatprep.subr.mxu0 0.0
      %408 = vmatpush1.msra.mxu0 %v371
      %409 = vmatprep.subr.mxu0 0.0
      %410 = vmatpush1.msra.mxu0 %v372
      %411 = vmatprep.subr.mxu0 0.0
      %412 = vmatpush1.msra.mxu0 %v373
      %413 = vmatprep.subr.mxu0 0.0
      %414 = vmatpush1.msra.mxu0 0.0
      %415 = vmatprep.subr.mxu0 0.0
      %416 = vmatpush1.msra.mxu0 0.0
      %417 = vmatprep.subr.mxu0 0.0
      %418 = vmatpush1.msra.mxu0 0.0
      %419 = vmatprep.subr.mxu0 0.0
      %420 = vmatpush1.msra.mxu0 0.0
      %421 = vmatprep.subr.mxu0 0.0
      %422 = vmatpush1.msra.mxu0 0.0
      %423 = vmatprep.subr.mxu0 0.0
      %424 = vmatpush1.msra.mxu0 0.0
      %425 = vmatprep.subr.mxu0 0.0
      %426 = vmatpush1.msra.mxu0 0.0
      %427 = vmatprep.subr.mxu0 0.0
      %428 = vmatpush1.msra.mxu0 0.0
      %429 = vmatprep.subr.mxu0 0.0
      %430 = vmatpush1.msra.mxu0 0.0
      %431 = vmatprep.subr.mxu0 0.0
      %432 = vmatpush1.msra.mxu0 0.0
      %433 = vmatprep.subr.mxu0 0.0
      %434 = vmatpush1.msra.mxu0 0.0
      %435 = vmatprep.subr.mxu0 0.0
      %436 = vmatpush1.msra.mxu0 0.0
      %437 = vmatprep.subr.mxu0 0.0
      %438 = vmatpush1.msra.mxu0 0.0
      %439 = vmatprep.subr.mxu0 0.0
      %440 = vmatpush1.msra.mxu0 0.0
      %441 = vmatprep.subr.mxu0 0.0
      %442 = vmatpush1.msra.mxu0 0.0
      %443 = vmatprep.subr.mxu0 0.0
      %444 = vmatpush1.msra.mxu0 0.0
      %445 = vmatprep.mubr.f32.mxu0 0.0
      %446 = vmatmul.mubr.f32.gmra.mrb[0].mxu0 %v357
      %v447 = vpop.f32.mrb[0].mxu0
      %v448 = vadd.f32 %v379, %v447
      %v449 = vpop.f32.mrb[0].mxu0
      %450 = vdwg.mxu0
      %v451 = vmax.f32 %v448, 0.0
      %v452 = vld [vmem:[%s5] sm:$0xff]
      %v453 = vld [vmem:[%s5 + $0x8] sm:$0xff]
      %v454 = vld [vmem:[%s5 + $0x10] sm:$0xff]
      %v455 = vld [vmem:[%s5 + $0x18] sm:$0xff]
      %v456 = vld [vmem:[%s5 + $0x20] sm:$0xff]
      %v457 = vld [vmem:[%s5 + $0x28] sm:$0xff]
      %v458 = vld [vmem:[%s5 + $0x30] sm:$0xff]
      %v459 = vld [vmem:[%s5 + $0x38] sm:$0xff]
      %v460 = vld [vmem:[%s5 + $0x40] sm:$0xff]
      %v461 = vld [vmem:[%s5 + $0x48] sm:$0xff]
      %v462 = vld [vmem:[%s5 + $0x50] sm:$0xff]
      %v463 = vld [vmem:[%s5 + $0x58] sm:$0xff]
      %v464 = vld [vmem:[%s5 + $0x60] sm:$0xff]
      %v465 = vld [vmem:[%s5 + $0x68] sm:$0xff]
      %v466 = vld [vmem:[%s5 + $0x70] sm:$0xff]
      %v467 = vld [vmem:[%s5 + $0x78] sm:$0xff]
      %v468 = vld [vmem:[%s6] sm:$0x1]
      %v470 = vlaneseq
      %v471 = vshrl.u32 %v470, 7
      %v472 = vsub.s32 0, %v471
      %v473 = vrot.slane %v468, %v472
      %475 = vmatprep.subr.mxu0 0.0
      %476 = vmatpush1.msra.mxu0 %v452
      %477 = vmatprep.subr.mxu0 0.0
      %478 = vmatpush1.msra.mxu0 %v453
      %479 = vmatprep.subr.mxu0 0.0
      %480 = vmatpush1.msra.mxu0 %v454
      %481 = vmatprep.subr.mxu0 0.0
      %482 = vmatpush1.msra.mxu0 %v455
      %483 = vmatprep.subr.mxu0 0.0
      %484 = vmatpush1.msra.mxu0 %v456
      %485 = vmatprep.subr.mxu0 0.0
      %486 = vmatpush1.msra.mxu0 %v457
      %487 = vmatprep.subr.mxu0 0.0
      %488 = vmatpush1.msra.mxu0 %v458
      %489 = vmatprep.subr.mxu0 0.0
      %490 = vmatpush1.msra.mxu0 %v459
      %491 = vmatprep.subr.mxu0 0.0
      %492 = vmatpush1.msra.mxu0 %v460
      %493 = vmatprep.subr.mxu0 0.0
      %494 = vmatpush1.msra.mxu0 %v461
      %495 = vmatprep.subr.mxu0 0.0
      %496 = vmatpush1.msra.mxu0 %v462
      %497 = vmatprep.subr.mxu0 0.0
      %498 = vmatpush1.msra.mxu0 %v463
      %499 = vmatprep.subr.mxu0 0.0
      %500 = vmatpush1.msra.mxu0 %v464
      %501 = vmatprep.subr.mxu0 0.0
      %502 = vmatpush1.msra.mxu0 %v465
      %503 = vmatprep.subr.mxu0 0.0
      %504 = vmatpush1.msra.mxu0 %v466
      %505 = vmatprep.subr.mxu0 0.0
      %506 = vmatpush1.msra.mxu0 %v467
      %507 = vmatprep.subr.mxu0 0.0
      %508 = vmatpush1.msra.mxu0 0.0
      %509 = vmatprep.subr.mxu0 0.0
      %510 = vmatpush1.msra.mxu0 0.0
      %511 = vmatprep.subr.mxu0 0.0
      %512 = vmatpush1.msra.mxu0 0.0
      %513 = vmatprep.subr.mxu0 0.0
      %514 = vmatpush1.msra.mxu0 0.0
      %515 = vmatprep.subr.mxu0 0.0
      %516 = vmatpush1.msra.mxu0 0.0
      %517 = vmatprep.subr.mxu0 0.0
      %518 = vmatpush1.msra.mxu0 0.0
      %519 = vmatprep.subr.mxu0 0.0
      %520 = vmatpush1.msra.mxu0 0.0
      %521 = vmatprep.subr.mxu0 0.0
      %522 = vmatpush1.msra.mxu0 0.0
      %523 = vmatprep.subr.mxu0 0.0
      %524 = vmatpush1.msra.mxu0 0.0
      %525 = vmatprep.subr.mxu0 0.0
      %526 = vmatpush1.msra.mxu0 0.0
      %527 = vmatprep.subr.mxu0 0.0
      %528 = vmatpush1.msra.mxu0 0.0
      %529 = vmatprep.subr.mxu0 0.0
      %530 = vmatpush1.msra.mxu0 0.0
      %531 = vmatprep.subr.mxu0 0.0
      %532 = vmatpush1.msra.mxu0 0.0
      %533 = vmatprep.subr.mxu0 0.0
      %534 = vmatpush1.msra.mxu0 0.0
      %535 = vmatprep.subr.mxu0 0.0
      %536 = vmatpush1.msra.mxu0 0.0
      %537 = vmatprep.subr.mxu0 0.0
      %538 = vmatpush1.msra.mxu0 0.0
      %539 = vmatprep.mubr.f32.mxu0 0.0
      %540 = vmatmul.mubr.f32.gmra.mrb[0].mxu0 %v451
      %v541 = vpop.f32.mrb[0].mxu0
      %v542 = vadd.f32 %v473, %v541
      %v543 = vpop.f32.mrb[0].mxu0
      %544 = vdwg.mxu0
      %vm545 = vcmask 31744
      %546 = vst.msk [vmem:[%s273] sm:$0xff] %vm545, %v542
      %p547 = scmp.lt.s32.totalorder %s18, 1
      %s548 = scalar_select %p547, %s18, 1
      %s549 = smul.addr %s548, 8
      %s550 = scalar_lea.vmem %s7, %s549
      // Predicated region
      $region49: #{tpu_custom_call.1} parent=47 // pred_check
        %p551 = pneg %p188
      $region50: #{tpu_custom_call.1} parent=47 // pred_check_branch
        %553 = sbr.rel (%p551) target = $region52
      $region51: #{tpu_custom_call.1} parent=47 // pred_region
        _
      $region52: #{tpu_custom_call.1} parent=47 // pred_fallthru
        _
    $region48: #{tpu_custom_call.1} parent=5 // pred_fallthru
      _
    %p554 = scmp.le.s32.totalorder 2, %s13
    // Predicated region
    $region53: #{tpu_custom_call.1} parent=5 // pred_check
      %p555 = pneg %p554
    $region54: #{tpu_custom_call.1} parent=5 // pred_check_branch
      %557 = sbr.rel (%p555) target = $region56
    $region55: #{tpu_custom_call.1} parent=5 // pred_region
      %s558 = ssub.s32 %s13, 2
      // Predicated region
      $region57: #{tpu_custom_call.1} parent=55 // pred_check
        %p559 = pneg %p194
      $region58: #{tpu_custom_call.1} parent=55 // pred_check_branch
        %561 = sbr.rel (%p559) target = $region60
      $region59: #{tpu_custom_call.1} parent=55 // pred_region
        %p562 = scmp.lt.s32.totalorder %s19, 1
        %s563 = scalar_select %p562, %s19, 1
        %s564 = smul.addr %s563, 8
        %s565 = scalar_lea.vmem %s7, %s564
      $region60: #{tpu_custom_call.1} parent=55 // pred_fallthru
        _
    $region56: #{tpu_custom_call.1} parent=5 // pred_fallthru
      _
  $region6: #{tpu_custom_call.1} parent=0 // loop_footer
    %s17 = sadd.s32 1, %s13
  $region7: #{tpu_custom_call.1} parent=0 // loop_footer_branch
    %12 = sbr.rel target = $region3
  $region8: #{tpu_custom_call.1} parent=0 // loop_exit
    _

</llo_original>
